<compile_context>
chip_gen: v6e
topology: v6e:2x2x1
jax: 0.10.0
libtpu: 0.0.40
codegen_flags: <defaults>
</compile_context>

<pallas_src>
import functools

import jax
import jax.numpy as jnp
from jax import lax
from jax.experimental import pallas as pl
from jax.experimental.pallas import tpu as pltpu


# ----------------------------------------------------------------------------
# Tiled linear:  y = x @ w + b   (q / kv projections)
# ----------------------------------------------------------------------------
def _pick_tile(dim, candidates):
    """Largest candidate tile that evenly divides `dim`, else the full dim."""
    for t in candidates:
        if dim % t == 0:
            return t
    # TODO(synk): for large non-128-aligned dims, pad to a multiple of 128
    # (ideally 256 for the v6e/v7x MXU) and mask, instead of a full-dim block.
    return dim


def linear_kernel(x_ref, w_ref, b_ref, o_ref, acc_ref):
    # x block: (tm, tk), w block: (tk, tn), b block: (1, tn), out: (tm, tn)
    @pl.when(pl.program_id(2) == 0)
    def _():
        acc_ref[...] = jnp.zeros_like(acc_ref)

    acc_ref[...] += jnp.dot(x_ref[...], w_ref[...],
                            preferred_element_type=jnp.float32)

    @pl.when(pl.program_id(2) == pl.num_programs(2) - 1)
    def _():
        o_ref[...] = (acc_ref[...] + b_ref[...].astype(jnp.float32)
                      ).astype(o_ref.dtype)


def linear_pallas(x, w, b):
    """y = x @ w + b, tiled over (M, Cout) with a K reduction loop."""
    M, Cin = x.shape
    Cout = w.shape[1]
    # Conservative tiles (~3 MiB double-buffered in f32) -> fits v5e's 16 MiB
    # scoped-VMEM default and v7x's 32 MiB without touching vmem_limit_bytes.
    tm = _pick_tile(M, (256, 128))
    tn = _pick_tile(Cout, (256, 128))
    tk = _pick_tile(Cin, (512, 256, 128))
    grid = (M // tm, Cout // tn, Cin // tk)

    return pl.pallas_call(
        linear_kernel,
        out_shape=jax.ShapeDtypeStruct((M, Cout), x.dtype),
        grid_spec=pltpu.PrefetchScalarGridSpec(
            num_scalar_prefetch=0,
            grid=grid,
            in_specs=[
                pl.BlockSpec((tm, tk), lambda i, j, k: (i, k)),
                pl.BlockSpec((tk, tn), lambda i, j, k: (k, j)),
                pl.BlockSpec((1, tn), lambda i, j, k: (0, j)),
            ],
            out_specs=pl.BlockSpec((tm, tn), lambda i, j, k: (i, j)),
            scratch_shapes=[pltpu.VMEM((tm, tn), jnp.float32)],
        ),
        compiler_params=pltpu.CompilerParams(
            dimension_semantics=("parallel", "parallel", "arbitrary")),
    )(x, w, b.reshape(1, Cout))


# ----------------------------------------------------------------------------
# Fused attention + output projection (TB batch elements per grid step)
# ----------------------------------------------------------------------------
def _attn_body(q_ref, kv_ref, mask_ref, wp_ref, bp_ref, o_ref, *,
               num_heads, scale):
    # q block : (TB, N, C)
    # kv block: (TB, N_kv, 2C) or (1, N_kv, 2C) (shared cross-attention kv)
    # mask    : None or (MB, N, N_kv) with MB | TB
    # wp      : (C, C), bp: (1, C), out: (TB, N, C)
    TB, N, C = q_ref.shape
    N_kv = kv_ref.shape[1]
    H = num_heads
    D = C // H

    # scale applied to q (N*C mults) instead of the f32 score matrix.
    q = q_ref[...] * scale                                     # (TB, N, C)
    kv = jnp.broadcast_to(kv_ref[...], (TB, N_kv, 2 * C))      # (TB, N_kv, 2C)

    # Head split once per step; merge (TB, H) into a single batch axis so the
    # whole step is two batched MXU contractions (no per-head slices/concat).
    qh = q.reshape(TB, N, H, D).transpose(0, 2, 1, 3).reshape(TB * H, N, D)
    kvh = kv.reshape(TB, N_kv, 2, H, D)
    kh = kvh[:, :, 0].transpose(0, 2, 1, 3).reshape(TB * H, N_kv, D)
    vh = kvh[:, :, 1].transpose(0, 2, 1, 3).reshape(TB * H, N_kv, D)

    # Q @ K^T (contract D, batch over TB*H), f32 accumulation.
    s = lax.dot_general(
        qh, kh,
        dimension_numbers=(((2,), (2,)), ((0,), (0,))),
        preferred_element_type=jnp.float32,
    )                                                          # (TB*H, N, N_kv)

    if mask_ref is not None:
        m = mask_ref[...].astype(jnp.float32)                  # (MB, N, N_kv)
        MB = m.shape[0]
        # slot t inside the block has window id (block_window_offset + t % MB);
        # the loaded mask block already starts at that offset (see index_map).
        s = s.reshape(TB // MB, MB, H, N, N_kv) + m[None, :, None]
        s = s.reshape(TB * H, N, N_kv)

    # numerically stable softmax over the key axis (nn.Softmax(dim=-1))
    s = s - jnp.max(s, axis=-1, keepdims=True)
    p = jnp.exp(s)
    p = p * pl.reciprocal(jnp.sum(p, axis=-1, keepdims=True), approx=False)

    # P @ V, batched over TB*H.
    o = lax.dot_general(
        p.astype(vh.dtype), vh,
        dimension_numbers=(((2,), (1,)), ((0,), (0,))),
        preferred_element_type=jnp.float32,
    )                                                          # (TB*H, N, D)

    # back to (TB*N, C) and fused output projection
    o = o.reshape(TB, H, N, D).transpose(0, 2, 1, 3).reshape(TB * N, C)
    y = jnp.dot(o.astype(wp_ref.dtype), wp_ref[...],
                preferred_element_type=jnp.float32)
    y = y + bp_ref[...].astype(jnp.float32)
    o_ref[...] = y.reshape(TB, N, C).astype(o_ref.dtype)


def attn_kernel_nomask(q_ref, kv_ref, wp_ref, bp_ref, o_ref, *,
                       num_heads, scale):
    _attn_body(q_ref, kv_ref, None, wp_ref, bp_ref, o_ref,
               num_heads=num_heads, scale=scale)


def attn_kernel_mask(mask_ref, q_ref, kv_ref, wp_ref, bp_ref, o_ref, *,
                     num_heads, scale):
    _attn_body(q_ref, kv_ref, mask_ref, wp_ref, bp_ref, o_ref,
               num_heads=num_heads, scale=scale)


def _pick_tb(B, N, N_kv, C, H, nW=None, budget_bytes=6 * 1024 * 1024):
    """Largest TB dividing B whose per-step working set fits the budget.

    For the mask path TB must additionally satisfy TB % nW == 0 or
    nW % TB == 0 so a single (resident or cheaply-cycled) mask block covers
    the whole step.
    """
    # rough per-batch-element f32 working set (q, kv, scores, out) with slop
    per_b = 4 * (2 * N * C + 2 * N_kv * C + 2 * H * N * N_kv + 2 * N * C)
    max_tb = max(1, min(B, budget_bytes // max(per_b, 1)))
    best = 1
    for tb in range(1, max_tb + 1):
        if B % tb != 0:
            continue
        if nW is not None and not (tb % nW == 0 or nW % tb == 0):
            continue
        best = tb
    return best


def attention_core_pallas(q, kv, mask, w_proj, b_proj, scale, num_heads):
    """q: (B, N, C); kv: (B, N_kv, 2C) or (1, N_kv, 2C) shared;
    mask: None or (nW, N, N) additive."""
    B, N, C = q.shape
    B_kv, N_kv, _ = kv.shape
    nW = mask.shape[0] if mask is not None else None

    TB = _pick_tb(B, N, N_kv, C, num_heads, nW)
    grid = (B // TB,)

    in_specs = []
    args = []
    if mask is not None:
        MB = min(TB, nW)
        mdiv = max(nW // TB, 1)        # 1 -> mask block resident across grid
        in_specs.append(
            pl.BlockSpec((MB, N, N_kv),
                         lambda b, _mdiv=mdiv: (b % _mdiv, 0, 0)))
        args.append(mask)              # cast to f32 inside the kernel
        kernel = functools.partial(attn_kernel_mask,
                                   num_heads=num_heads, scale=scale)
    else:
        kernel = functools.partial(attn_kernel_nomask,
                                   num_heads=num_heads, scale=scale)

    if B_kv == 1:
        # shared cross-attention kv: single block, resident across the grid
        kv_spec = pl.BlockSpec((1, N_kv, 2 * C), lambda b: (0, 0, 0))
    else:
        kv_spec = pl.BlockSpec((TB, N_kv, 2 * C), lambda b: (b, 0, 0))

    in_specs += [
        pl.BlockSpec((TB, N, C), lambda b: (b, 0, 0)),          # q
        kv_spec,                                                # kv
        pl.BlockSpec((C, C), lambda b: (0, 0)),                 # w_proj
        pl.BlockSpec((1, C), lambda b: (0, 0)),                 # b_proj
    ]
    args += [q, kv, w_proj, b_proj.reshape(1, C)]

    return pl.pallas_call(
        kernel,
        out_shape=jax.ShapeDtypeStruct((B, N, C), q.dtype),
        grid=grid,
        in_specs=in_specs,
        out_specs=pl.BlockSpec((TB, N, C), lambda b: (b, 0, 0)),
        compiler_params=pltpu.CompilerParams(
            dimension_semantics=("parallel",)),
    )(*args)


# ----------------------------------------------------------------------------
# Module: parameters + forward
# ----------------------------------------------------------------------------
def init_attention_params(key, dim, num_heads, dtype=jnp.float32):
    """nn.Linear-shaped params (weights stored (in, out)); uniform +-1/sqrt(fan_in).

    Use dtype=jnp.bfloat16 on v6e/v7x for ~2x MXU throughput and half the
    DMA bytes (f32 accumulation is kept inside the kernels).
    """
    assert dim % num_heads == 0, "dim must be divisible by num_heads"
    inner_dim = (dim // num_heads) * num_heads
    ks = jax.random.split(key, 6)
    bound = 1.0 / (dim ** 0.5)

    def u(k, shape):
        return jax.random.uniform(k, shape, dtype, minval=-bound, maxval=bound)

    return {
        "w_q": u(ks[0], (dim, inner_dim)),
        "b_q": u(ks[1], (inner_dim,)),
        "w_kv": u(ks[2], (dim, 2 * inner_dim)),
        "b_kv": u(ks[3], (2 * inner_dim,)),
        "w_proj": u(ks[4], (dim, dim)),
        "b_proj": u(ks[5], (dim,)),
    }


def attention_forward(params, x, num_heads, attn_kv=None, mask=None):
    """Pallas implementation of Attention.forward.

    x: (B, N, C); attn_kv: optional (N_kv, C) shared across batch;
    mask: optional (nW, N, N) additive mask with B % nW == 0 (requires
    self-attention, i.e. N_kv == N, exactly like the PyTorch view()).
    """
    B, N, C = x.shape
    H = num_heads
    assert C % H == 0, "dim must be divisible by num_heads"
    D = C // H
    scale = D ** (-0.5)

    if mask is not None:
        assert attn_kv is None, "mask path requires self-attention"
        assert B % mask.shape[0] == 0, "batch must be a multiple of nW"

    # --- q projection (tiled Pallas matmul), kept in (B, N, C) layout ---
    q = linear_pallas(x.reshape(B * N, C), params["w_q"], params["b_q"])
    q = q.reshape(B, N, C)

    # --- kv projection: project attn_kv ONCE if shared (no B-fold repeat) ---
    if attn_kv is None:
        kv = linear_pallas(x.reshape(B * N, C), params["w_kv"], params["b_kv"])
        kv = kv.reshape(B, N, 2 * C)
    else:
        N_kv = attn_kv.shape[0]
        kv = linear_pallas(attn_kv, params["w_kv"], params["b_kv"])
        kv = kv.reshape(1, N_kv, 2 * C)     # broadcast inside the kernel

    # --- fused attention + output projection kernel ---
    return attention_core_pallas(q, kv, mask,
                                 params["w_proj"], params["b_proj"],
                                 scale, H)


# ----------------------------------------------------------------------------
# Pure-JAX reference (for correctness check)
# ----------------------------------------------------------------------------
def attention_reference(params, x, num_heads, attn_kv=None, mask=None):
    B, N, C = x.shape
    H, D = num_heads, C // num_heads
    scale = D ** (-0.5)
    kv_in = x if attn_kv is None else jnp.broadcast_to(
        attn_kv[None], (B,) + attn_kv.shape)
    N_kv = kv_in.shape[1]
    q = (x.reshape(B * N, C) @ params["w_q"] + params["b_q"]).reshape(B, N, H, D)
    kv = (kv_in.reshape(B * N_kv, C) @ params["w_kv"] + params["b_kv"]
          ).reshape(B, N_kv, 2, H, D)
    q = q.transpose(0, 2, 1, 3) * scale
    k = kv[:, :, 0].transpose(0, 2, 1, 3)
    v = kv[:, :, 1].transpose(0, 2, 1, 3)
    attn = jnp.einsum("bhnd,bhmd->bhnm", q, k)
    if mask is not None:
        nW = mask.shape[0]
        attn = attn.reshape(B // nW, nW, H, N, N) + mask[None, :, None]
        attn = attn.reshape(B, H, N, N_kv)
    attn = jax.nn.softmax(attn, axis=-1)
    out = jnp.einsum("bhnm,bhmd->bhnd", attn, v)
    out = out.transpose(0, 2, 1, 3).reshape(B * N, C)
    out = out @ params["w_proj"] + params["b_proj"]
    return out.reshape(B, N, C)


# ----------------------------------------------------------------------------
if __name__ == "__main__":
    B, N, C, H = 2, 16, 32, 4  # batch=2, tokens=16, dim=32, heads=4

    key = jax.random.PRNGKey(0)
    k_params, k_x, k_mask, k_kv = jax.random.split(key, 4)

    params = init_attention_params(k_params, dim=C, num_heads=H)
    x = jax.random.normal(k_x, (B, N, C), dtype=jnp.float32)

    TOL = dict(atol=2e-3, rtol=2e-3)  # headroom for MXU f32 accumulation path

    # Path 1: self-attention, no mask
    y = jax.block_until_ready(attention_forward(params, x, num_heads=H))
    y_ref = attention_reference(params, x, num_heads=H)
    assert jnp.allclose(y, y_ref, **TOL), "no-mask path mismatch"

    # Path 2: windowed additive mask (nW=2 windows over the batch)
    nW = 2
    mask = jnp.where(
        jax.random.uniform(k_mask, (nW, N, N)) > 0.5, 0.0, -100.0
    ).astype(jnp.float32)
    y_m = jax.block_until_ready(
        attention_forward(params, x, num_heads=H, mask=mask))
    y_m_ref = attention_reference(params, x, num_heads=H, mask=mask)
    assert jnp.allclose(y_m, y_m_ref, **TOL), "mask path mismatch"

    # Path 3: cross-attention (attn_kv shared across batch, N_kv != N)
    N_kv = 8
    attn_kv = jax.random.normal(k_kv, (N_kv, C), dtype=jnp.float32)
    y_c = jax.block_until_ready(
        attention_forward(params, x, num_heads=H, attn_kv=attn_kv))
    y_c_ref = attention_reference(params, x, num_heads=H, attn_kv=attn_kv)
    assert jnp.allclose(y_c, y_c_ref, **TOL), "cross-attention path mismatch"

    print("KERNEL_OK")
</pallas_src>

<mosaic_0001>
module attributes {stable_mosaic.version = 11 : i64} {
  func.func @linear_kernel(%arg0: i32, %arg1: i32, %arg2: i32, %arg3: memref<32x32xf32, #tpu.memory_space<vmem>>, %arg4: memref<32x32xf32, #tpu.memory_space<vmem>>, %arg5: memref<1x32xf32, #tpu.memory_space<vmem>>, %arg6: memref<32x32xf32, #tpu.memory_space<vmem>>, %arg7: memref<32x32xf32, #tpu.memory_space<vmem>>) attributes {dimension_semantics = [#tpu.dimension_semantics<parallel>, #tpu.dimension_semantics<parallel>, #tpu.dimension_semantics<arbitrary>], iteration_bounds = array<i64: 1, 1, 1>, scalar_prefetch = 0 : i64, scratch_operands = 1 : i64, tpu.core_type = #tpu.core_type<tc>, window_params = [{transform_indices = @transform_0, window_bounds = array<i64: 32, 32>}, {transform_indices = @transform_1, window_bounds = array<i64: 32, 32>}, {transform_indices = @transform_2, window_bounds = array<i64: 1, 32>}, {transform_indices = @transform_3, window_bounds = array<i64: 32, 32>}]} {
    %c0_i32 = arith.constant 0 : i32
    %0 = arith.cmpi eq, %arg2, %c0_i32 : i32
    %1 = arith.extui %0 : i1 to i32
    %c0_i32_0 = arith.constant 0 : i32
    %2 = arith.cmpi ne, %1, %c0_i32_0 : i32
    scf.if %2 {
      %cst_10 = arith.constant 0.000000e+00 : f32
      %12 = vector.broadcast %cst_10 : f32 to vector<32x32xf32>
      %c0_11 = arith.constant 0 : index
      %c0_12 = arith.constant 0 : index
      %13 = vector.load %arg7[%c0_11, %c0_12] : memref<32x32xf32, #tpu.memory_space<vmem>>, vector<32x32xf32>
      tpu.vector_store %arg7[%c0_11, %c0_12], %12 {strides = array<i32>} : memref<32x32xf32, #tpu.memory_space<vmem>>, vector<32x32xf32>,
    } else {
    }
    %c0 = arith.constant 0 : index
    %c0_1 = arith.constant 0 : index
    %3 = vector.load %arg7[%c0, %c0_1] : memref<32x32xf32, #tpu.memory_space<vmem>>, vector<32x32xf32>
    %c0_2 = arith.constant 0 : index
    %c0_3 = arith.constant 0 : index
    %4 = vector.load %arg3[%c0_2, %c0_3] : memref<32x32xf32, #tpu.memory_space<vmem>>, vector<32x32xf32>
    %c0_4 = arith.constant 0 : index
    %c0_5 = arith.constant 0 : index
    %5 = vector.load %arg4[%c0_4, %c0_5] : memref<32x32xf32, #tpu.memory_space<vmem>>, vector<32x32xf32>
    %cst = arith.constant dense<0.000000e+00> : vector<32x32xf32>
    %6 = tpu.matmul %4, %5, %cst {dimension_numbers = #tpu.dot_dimension_numbers<[1], [0], [0], [1], [0, 0, 1, 1], [], []>} : vector<32x32xf32>, vector<32x32xf32>, vector<32x32xf32> -> vector<32x32xf32>
    %7 = arith.addf %3, %6 : vector<32x32xf32>
    %c0_6 = arith.constant 0 : index
    %c0_7 = arith.constant 0 : index
    %8 = vector.load %arg7[%c0_6, %c0_7] : memref<32x32xf32, #tpu.memory_space<vmem>>, vector<32x32xf32>
    tpu.vector_store %arg7[%c0_6, %c0_7], %7 {strides = array<i32>} : memref<32x32xf32, #tpu.memory_space<vmem>>, vector<32x32xf32>,
    %c0_i32_8 = arith.constant 0 : i32
    %9 = arith.cmpi eq, %arg2, %c0_i32_8 : i32
    %10 = arith.extui %9 : i1 to i32
    %c0_i32_9 = arith.constant 0 : i32
    %11 = arith.cmpi ne, %10, %c0_i32_9 : i32
    scf.if %11 {
      %c0_10 = arith.constant 0 : index
      %c0_11 = arith.constant 0 : index
      %12 = vector.load %arg7[%c0_10, %c0_11] : memref<32x32xf32, #tpu.memory_space<vmem>>, vector<32x32xf32>
      %c0_12 = arith.constant 0 : index
      %c0_13 = arith.constant 0 : index
      %13 = vector.load %arg5[%c0_12, %c0_13] : memref<1x32xf32, #tpu.memory_space<vmem>>, vector<1x32xf32>
      %14 = vector.broadcast %13 : vector<1x32xf32> to vector<32x32xf32>
      %15 = arith.addf %12, %14 : vector<32x32xf32>
      %c0_14 = arith.constant 0 : index
      %c0_15 = arith.constant 0 : index
      %16 = vector.load %arg6[%c0_14, %c0_15] : memref<32x32xf32, #tpu.memory_space<vmem>>, vector<32x32xf32>
      tpu.vector_store %arg6[%c0_14, %c0_15], %15 {strides = array<i32>} : memref<32x32xf32, #tpu.memory_space<vmem>>, vector<32x32xf32>,
    } else {
    }
    return
  }
  func.func @transform_0(%arg0: i32, %arg1: i32, %arg2: i32) -> (i32, i32) {
    %c0_i32 = arith.constant 0 : i32
    return %arg0, %arg2 : i32, i32
  }
  func.func @transform_1(%arg0: i32, %arg1: i32, %arg2: i32) -> (i32, i32) {
    %c0_i32 = arith.constant 0 : i32
    return %arg2, %arg1 : i32, i32
  }
  func.func @transform_2(%arg0: i32, %arg1: i32, %arg2: i32) -> (i32, i32) {
    %c0_i32 = arith.constant 0 : i32
    %c0_i32_0 = arith.constant 0 : i32
    return %c0_i32, %arg1 : i32, i32
  }
  func.func @transform_3(%arg0: i32, %arg1: i32, %arg2: i32) -> (i32, i32) {
    %c0_i32 = arith.constant 0 : i32
    return %arg0, %arg1 : i32, i32
  }
}

</mosaic_0001>

<llo_original>
// kernel: tpu_custom_call.1
$region0: #{tpu_custom_call.1}
  #allocation0 [shape = 'u32[]', space=smem, size = 0x4, offset = 0x4, fixed_abs, tag = 'smem constant byte address 0x4 - core index']
  #allocation1 [shape = 'u32[144,128]{1,0:T(1,128)}', space=vmem, size = 0x12000, scoped, tag = 'internal scratch']
  #allocation2 [shape = 'f32[32,32]{1,0:T(8,128)}', space=vmem, size = 0x4000, scoped, tag = 'scratch operand']
  %s0 = inlined_call_operand.hbm [shape: f32[32,32], index: 0, kind: input, shape index: {}]
  %s1 = inlined_call_operand.hbm [shape: f32[32,32], index: 1, kind: input, shape index: {}]
  %s2 = inlined_call_operand.vmem [shape: f32[1,32], index: 2, kind: input, shape index: {}]
  %s3 = inlined_call_operand.hbm [shape: f32[32,32], index: 3, kind: output, shape index: {}]
  %s4 = sld [smem:[#allocation0]]
  $region38: #{tpu_custom_call.1} parent=0
    _
  %s6 = ssub.s32 1, %s4
  %s7 = scalar_select 0, %s6, %s4
  $region1: #{tpu_custom_call.1} parent=0
    #allocation3 [shape = 'u8[16384]{0}', space=vmem, size = 0x4000, scoped, tag = 'input window, operand 0, single buffered']
    #allocation4 [shape = 's32[1]{0}', space=sflag, size = 0x4, scoped, tag = 'scoped memory for tpu_custom_call.1']
    #allocation5 [shape = 's32[1]{0}', space=sflag, size = 0x4, scoped, tag = 'scoped memory for tpu_custom_call.1']
    #allocation6 [shape = 'u8[16384]{0}', space=vmem, size = 0x4000, scoped, tag = 'input window, operand 1, single buffered']
    #allocation7 [shape = 's32[1]{0}', space=sflag, size = 0x4, scoped, tag = 'scoped memory for tpu_custom_call.1']
    #allocation8 [shape = 'u8[16384]{0}', space=vmem, size = 0x4000, scoped, tag = 'output window, operand 0, single buffered']
    %8 = vsyncpa [#allocation4], 0
    %9 = vsyncpa [#allocation7], 0
    %10 = vsyncpa [#allocation5], 0
    // Predicated region
    $region2: #{tpu_custom_call.1} parent=1 // pred_check
      _
    $region3: #{tpu_custom_call.1} parent=1 // pred_check_branch
      %12 = sbr.rel (0) target = $region5
    $region4: #{tpu_custom_call.1} parent=1 // pred_region
      %s14 = ssub.s32 512, 512
      %15 = vsyncadd [#allocation4], %s14
      %s16 = sshll.u32 [#allocation3], 4
      %s17 = int_to_ptr.vmem [resolvable:$true] %s16
      %22 = dma.hbm_to_vmem [thread:$0]  %s0, 512, %s17, [#allocation4], 128, 128, 8
    $region5: #{tpu_custom_call.1} parent=1 // pred_fallthru
      _
    // Predicated region
    $region6: #{tpu_custom_call.1} parent=1 // pred_check
      _
    $region7: #{tpu_custom_call.1} parent=1 // pred_check_branch
      %24 = sbr.rel (0) target = $region9
    $region8: #{tpu_custom_call.1} parent=1 // pred_region
      %s26 = ssub.s32 512, 512
      %27 = vsyncadd [#allocation7], %s26
      %s28 = sshll.u32 [#allocation6], 4
      %s29 = int_to_ptr.vmem [resolvable:$true] %s28
      %34 = dma.hbm_to_vmem [thread:$0]  %s1, 512, %s29, [#allocation7], 128, 128, 8
    $region9: #{tpu_custom_call.1} parent=1 // pred_fallthru
      _
    // Predicated region
    $region10: #{tpu_custom_call.1} parent=1 // pred_check
      _
    $region11: #{tpu_custom_call.1} parent=1 // pred_check_branch
      %36 = sbr.rel (0) target = $region13
    $region12: #{tpu_custom_call.1} parent=1 // pred_region
      _
    $region13: #{tpu_custom_call.1} parent=1 // pred_fallthru
      _
    // Predicated region
    $region14: #{tpu_custom_call.1} parent=1 // pred_check
      _
    $region15: #{tpu_custom_call.1} parent=1 // pred_check_branch
      %38 = sbr.rel (0) target = $region17
    $region16: #{tpu_custom_call.1} parent=1 // pred_region
      %39 = dma.done [#allocation4], 512
    $region17: #{tpu_custom_call.1} parent=1 // pred_fallthru
      _
    // Predicated region
    $region18: #{tpu_custom_call.1} parent=1 // pred_check
      _
    $region19: #{tpu_custom_call.1} parent=1 // pred_check_branch
      %41 = sbr.rel (0) target = $region21
    $region20: #{tpu_custom_call.1} parent=1 // pred_region
      %42 = dma.done [#allocation7], 512
    $region21: #{tpu_custom_call.1} parent=1 // pred_fallthru
      _
    %p43 = scmp.eq.s32.totalorder 0, 0
    // Predicated region
    $region22: #{tpu_custom_call.1} parent=1 // pred_check
      %p44 = pneg %p43
    $region23: #{tpu_custom_call.1} parent=1 // pred_check_branch
      %46 = sbr.rel (%p44) target = $region25
    $region24: #{tpu_custom_call.1} parent=1 // pred_region
      %vm47 = vcmask 261120
      %48 = vst.msk [vmem:[#allocation2] sm:$0xff] %vm47, 0.0
      %49 = vst.msk [vmem:[#allocation2 + $0x8] sm:$0xff] %vm47, 0.0
      %50 = vst.msk [vmem:[#allocation2 + $0x10] sm:$0xff] %vm47, 0.0
      %51 = vst.msk [vmem:[#allocation2 + $0x18] sm:$0xff] %vm47, 0.0
    $region25: #{tpu_custom_call.1} parent=1 // pred_fallthru
      _
    %v52 = vld [vmem:[#allocation2] sm:$0xff]
    %v53 = vld [vmem:[#allocation2 + $0x8] sm:$0xff]
    %v54 = vld [vmem:[#allocation2 + $0x10] sm:$0xff]
    %v55 = vld [vmem:[#allocation2 + $0x18] sm:$0xff]
    %v56 = vld [vmem:[#allocation3] sm:$0xff]
    %v57 = vld [vmem:[#allocation3 + $0x8] sm:$0xff]
    %v58 = vld [vmem:[#allocation3 + $0x10] sm:$0xff]
    %v59 = vld [vmem:[#allocation3 + $0x18] sm:$0xff]
    %v60 = vld [vmem:[#allocation6] sm:$0xff]
    %v61 = vld [vmem:[#allocation6 + $0x8] sm:$0xff]
    %v62 = vld [vmem:[#allocation6 + $0x10] sm:$0xff]
    %v63 = vld [vmem:[#allocation6 + $0x18] sm:$0xff]
    %vm64 = vcmask 261120
    %v66 = vsel %vm64, %v56, 0
    %v69 = vsel %vm64, %v57, 0
    %v72 = vsel %vm64, %v58, 0
    %v75 = vsel %vm64, %v59, 0
    %77 = vmatprep.subr.mxu0 0.0
    %78 = vmatpush1.msra.mxu0 0.0
    %79 = vmatprep.subr.mxu0 0.0
    %80 = vmatpush1.msra.mxu0 0.0
    %81 = vmatprep.subr.mxu0 0.0
    %82 = vmatpush1.msra.mxu0 0.0
    %83 = vmatprep.subr.mxu0 0.0
    %84 = vmatpush1.msra.mxu0 0.0
    %85 = vmatprep.subr.mxu0 0.0
    %86 = vmatpush1.msra.mxu0 0.0
    %87 = vmatprep.subr.mxu0 0.0
    %88 = vmatpush1.msra.mxu0 0.0
    %89 = vmatprep.subr.mxu0 0.0
    %90 = vmatpush1.msra.mxu0 0.0
    %91 = vmatprep.subr.mxu0 0.0
    %92 = vmatpush1.msra.mxu0 0.0
    %93 = vmatprep.subr.mxu0 0.0
    %94 = vmatpush1.msra.mxu0 0.0
    %95 = vmatprep.subr.mxu0 0.0
    %96 = vmatpush1.msra.mxu0 0.0
    %97 = vmatprep.subr.mxu0 0.0
    %98 = vmatpush1.msra.mxu0 0.0
    %99 = vmatprep.subr.mxu0 0.0
    %100 = vmatpush1.msra.mxu0 0.0
    %101 = vmatprep.subr.mxu0 0.0
    %102 = vmatpush1.msra.mxu0 %v63
    %103 = vmatprep.subr.mxu0 0.0
    %104 = vmatpush1.msra.mxu0 %v62
    %105 = vmatprep.subr.mxu0 0.0
    %106 = vmatpush1.msra.mxu0 %v61
    %107 = vmatprep.subr.mxu0 0.0
    %108 = vmatpush1.msra.mxu0 %v60
    %109 = vmatprep.subr.mxu0 0.0
    %110 = vmatpush2.msra.mxu0 0.0
    %111 = vmatprep.subr.mxu0 0.0
    %112 = vmatpush2.msra.mxu0 0.0
    %113 = vmatprep.subr.mxu0 0.0
    %114 = vmatpush2.msra.mxu0 0.0
    %115 = vmatprep.subr.mxu0 0.0
    %116 = vmatpush2.msra.mxu0 0.0
    %117 = vmatprep.subr.mxu0 0.0
    %118 = vmatpush2.msra.mxu0 0.0
    %119 = vmatprep.subr.mxu0 0.0
    %120 = vmatpush2.msra.mxu0 0.0
    %121 = vmatprep.subr.mxu0 0.0
    %122 = vmatpush2.msra.mxu0 0.0
    %123 = vmatprep.subr.mxu0 0.0
    %124 = vmatpush2.msra.mxu0 0.0
    %125 = vmatprep.subr.mxu0 0.0
    %126 = vmatpush2.msra.mxu0 0.0
    %127 = vmatprep.subr.mxu0 0.0
    %128 = vmatpush2.msra.mxu0 0.0
    %129 = vmatprep.subr.mxu0 0.0
    %130 = vmatpush2.msra.mxu0 0.0
    %131 = vmatprep.subr.mxu0 0.0
    %132 = vmatpush2.msra.mxu0 0.0
    %133 = vmatprep.subr.mxu0 0.0
    %134 = vmatpush2.msra.mxu0 0.0
    %135 = vmatprep.subr.mxu0 0.0
    %136 = vmatpush2.msra.mxu0 0.0
    %137 = vmatprep.subr.mxu0 0.0
    %138 = vmatpush2.msra.mxu0 0.0
    %139 = vmatprep.subr.mxu0 0.0
    %140 = vmatpush2.msra.mxu0 0.0
    %141 = vmatprep.mubr.f32.mxu0 0.0
    %142 = vmatmul.mubr.f32.gmra.mxu0 %v66
    %v143 = vpop.f32.mrf.mxu0
    %v144 = vadd.f32 0.0, %v143
    %v145 = vpop.f32.mrf.mxu0
    %146 = vmatprep.mubr.f32.mxu0 0.0
    %147 = vmatmul.mubr.f32.gmra.mxu0 %v69
    %v148 = vpop.f32.mrf.mxu0
    %v149 = vadd.f32 0.0, %v148
    %v150 = vpop.f32.mrf.mxu0
    %151 = vmatprep.mubr.f32.mxu0 0.0
    %152 = vmatmul.mubr.f32.gmra.mxu0 %v72
    %v153 = vpop.f32.mrf.mxu0
    %v154 = vadd.f32 0.0, %v153
    %v155 = vpop.f32.mrf.mxu0
    %156 = vmatprep.mubr.f32.mxu0 0.0
    %157 = vmatmul.mubr.f32.gmra.mxu0 %v75
    %v158 = vpop.f32.mrf.mxu0
    %v159 = vadd.f32 0.0, %v158
    %v160 = vpop.f32.mrf.mxu0
    %161 = vdwg.mxu0
    %v162 = vadd.f32 %v52, %v144
    %v163 = vadd.f32 %v53, %v149
    %v164 = vadd.f32 %v54, %v154
    %v165 = vadd.f32 %v55, %v159
    %166 = vst.msk [vmem:[#allocation2] sm:$0xff] %vm64, %v162
    %167 = vst.msk [vmem:[#allocation2 + $0x8] sm:$0xff] %vm64, %v163
    %168 = vst.msk [vmem:[#allocation2 + $0x10] sm:$0xff] %vm64, %v164
    %169 = vst.msk [vmem:[#allocation2 + $0x18] sm:$0xff] %vm64, %v165
    // Predicated region
    $region26: #{tpu_custom_call.1} parent=1 // pred_check
      %p170 = pneg %p43
    $region27: #{tpu_custom_call.1} parent=1 // pred_check_branch
      %172 = sbr.rel (%p170) target = $region29
    $region28: #{tpu_custom_call.1} parent=1 // pred_region
      %v173 = vld [vmem:[#allocation2] sm:$0xff]
      %v174 = vld [vmem:[#allocation2 + $0x8] sm:$0xff]
      %v175 = vld [vmem:[#allocation2 + $0x10] sm:$0xff]
      %v176 = vld [vmem:[#allocation2 + $0x18] sm:$0xff]
      %v177 = vld [vmem:[%s2] sm:$0x1]
      %v179 = vlaneseq
      %v180 = vshrl.u32 %v179, 7
      %v181 = vsub.s32 0, %v180
      %v182 = vrot.slane %v177, %v181
      %v184 = vadd.f32 %v173, %v182
      %v185 = vadd.f32 %v174, %v182
      %v186 = vadd.f32 %v175, %v182
      %v187 = vadd.f32 %v176, %v182
      %188 = vst.msk [vmem:[#allocation8] sm:$0xff] %vm64, %v184
      %189 = vst.msk [vmem:[#allocation8 + $0x8] sm:$0xff] %vm64, %v185
      %190 = vst.msk [vmem:[#allocation8 + $0x10] sm:$0xff] %vm64, %v186
      %191 = vst.msk [vmem:[#allocation8 + $0x18] sm:$0xff] %vm64, %v187
    $region29: #{tpu_custom_call.1} parent=1 // pred_fallthru
      _
    // Predicated region
    $region30: #{tpu_custom_call.1} parent=1 // pred_check
      _
    $region31: #{tpu_custom_call.1} parent=1 // pred_check_branch
      %193 = sbr.rel (0) target = $region33
    $region32: #{tpu_custom_call.1} parent=1 // pred_region
      %s195 = ssub.s32 512, 512
      %196 = vsyncadd [#allocation5], %s195
      %s197 = sshll.u32 [#allocation8], 4
      %s198 = int_to_ptr.vmem [resolvable:$true] %s197
      %203 = dma.vmem_to_hbm [thread:$0]  %s198, 512, %s3, [#allocation5], 128, 128, 8
    $region33: #{tpu_custom_call.1} parent=1 // pred_fallthru
      _
    // Predicated region
    $region34: #{tpu_custom_call.1} parent=1 // pred_check
      _
    $region35: #{tpu_custom_call.1} parent=1 // pred_check_branch
      %205 = sbr.rel (0) target = $region37
    $region36: #{tpu_custom_call.1} parent=1 // pred_region
      %206 = dma.done [#allocation5], 512
    $region37: #{tpu_custom_call.1} parent=1 // pred_fallthru
      _
    %207 = vsyncpa [#allocation4], 1
    %208 = vsyncpa [#allocation7], 1
    %209 = vsyncpa [#allocation5], 1

</llo_original>
